<compile_context>
chip_gen: v7x
topology: tpu7x:2x2x1
jax: 0.10.0
libtpu: 0.0.40
codegen_flags: <defaults>
</compile_context>

<pallas_src>
import functools

import jax
import jax.numpy as jnp
from jax.experimental import pallas as pl
from jax.experimental.pallas import tpu as pltpu

NEG_SLOPE = 0.01  # PyTorch nn.LeakyReLU default


def _leaky_relu(x):
    return jnp.where(x > 0, x, NEG_SLOPE * x)


def _round_up(n, m):
    return ((n + m - 1) // m) * m


def mlp_kernel(x_ref, w1_ref, b1_ref, w2_ref, b2_ref, w3_ref, b3_ref, o_ref):
    # Layer 1: Linear (MXU, bf16 operands, f32 accumulation) + LeakyReLU in f32.
    h = jnp.dot(x_ref[...], w1_ref[...], preferred_element_type=jnp.float32)
    h = _leaky_relu(h + b1_ref[...])
    # Layer 2: cast the f32 activation back to the weight dtype for the MXU.
    h = jnp.dot(h.astype(w2_ref.dtype), w2_ref[...],
                preferred_element_type=jnp.float32)
    h = _leaky_relu(h + b2_ref[...])
    # Output layer: Linear, no activation.
    out = jnp.dot(h.astype(w3_ref.dtype), w3_ref[...],
                  preferred_element_type=jnp.float32) + b3_ref[...]
    o_ref[...] = out.astype(o_ref.dtype)


@functools.partial(jax.jit, static_argnames=("block_m", "use_bf16"))
def mlp_mode_forward(x, hidden, params, *, block_m=1024, use_bf16=True):
    """Pallas implementation of MlpMode.forward(x, hidden) = (MLP(x), hidden)."""
    w1, b1, w2, b2, w3, b3 = params
    batch, sens = x.shape
    h1 = w1.shape[1]
    h2 = w2.shape[1]
    priv = w3.shape[1]
    out_dtype = x.dtype

    # bf16 on the MXU (native on v5e/v6e/v7x) with f32 accumulation; biases and
    # all elementwise math stay f32.
    if use_bf16:
        x_in = x.astype(jnp.bfloat16)
        w1, w2, w3 = (w.astype(jnp.bfloat16) for w in (w1, w2, w3))
    else:
        x_in = x
    b1, b2, b3 = (b.astype(jnp.float32) for b in (b1, b2, b3))

    # Large M tile: per-grid-step overhead is ~0.35 us, so use the biggest tile
    # that covers the batch (capped at block_m, rounded to the 8-sublane
    # granularity).  At these feature widths even a 2048-row tile is far below
    # every generation's scoped-VMEM default (incl. v7x's 32 MiB), so no
    # vmem_limit_bytes override is needed.  For very large batches on v7x,
    # halve block_m if you want a grid length >= 2 to use both TensorCores.
    bm = _round_up(min(block_m, _round_up(batch, 8)), 8)
    padded = _round_up(batch, bm)
    if padded != batch:
        x_in = jnp.pad(x_in, ((0, padded - batch), (0, 0)))
    grid = (padded // bm,)

    # Constant index_map => same block every step: weights/biases stay resident.
    full = lambda shape: pl.BlockSpec(shape, lambda i: (0, 0))

    pred = pl.pallas_call(
        mlp_kernel,
        out_shape=jax.ShapeDtypeStruct((padded, priv), out_dtype),
        grid=grid,
        in_specs=[
            pl.BlockSpec((bm, sens), lambda i: (i, 0)),  # streamed x tile
            full((sens, h1)), full((1, h1)),             # layer 1 (resident)
            full((h1, h2)), full((1, h2)),               # layer 2 (resident)
            full((h2, priv)), full((1, priv)),           # output layer (resident)
        ],
        out_specs=pl.BlockSpec((bm, priv), lambda i: (i, 0)),
        compiler_params=pltpu.CompilerParams(
            dimension_semantics=("parallel",)),  # lets v7x shard grid over 2 TCs
    )(x_in, w1, b1, w2, b2, w3, b3)

    if padded != batch:
        pred = pred[:batch]
    return pred, hidden


def init_params(key, sens_size, hidden_to_pred_shape, priv_size,
                init_scale=1.0 / jnp.sqrt(2.0)):
    """Deterministic synthetic init (shapes match rslgym MLP)."""
    dims = [sens_size] + list(hidden_to_pred_shape) + [priv_size]
    params = []
    for i in range(len(dims) - 1):
        key, wk = jax.random.split(key)
        fan_in, fan_out = dims[i], dims[i + 1]
        w = init_scale * jax.random.normal(wk, (fan_in, fan_out),
                                           jnp.float32) / jnp.sqrt(fan_in)
        b = jnp.zeros((1, fan_out), jnp.float32)
        params += [w, b]
    return tuple(params)


def mlp_ref(x, params):
    """Pure-JAX f32 reference of the MLP forward."""
    w1, b1, w2, b2, w3, b3 = params
    h = _leaky_relu(x @ w1 + b1)
    h = _leaky_relu(h @ w2 + b2)
    return h @ w3 + b3


if __name__ == "__main__":
    # Config implied by the module: sens_size -> hidden_to_pred_shape -> priv_size
    sens_size = 32
    hidden_to_pred_shape = [64, 32]
    priv_size = 16
    num_rnn_layers = 2
    hidden_size = 32
    batch = 16

    key = jax.random.PRNGKey(0)
    key, xk = jax.random.split(key)
    x = jax.random.normal(xk, (batch, sens_size), jnp.float32)
    hidden = jnp.zeros((num_rnn_layers, batch, hidden_size), jnp.float32)

    params = init_params(key, sens_size, hidden_to_pred_shape, priv_size)

    pred, next_hidden = mlp_mode_forward(x, hidden, params)
    jax.block_until_ready(pred)
    jax.block_until_ready(next_hidden)

    # Sanity check vs a pure-JAX f32 reference.  The kernel runs bf16 matmuls
    # with f32 accumulation, so the tolerance is bf16-level.
    ref = mlp_ref(x, params)
    assert pred.shape == (batch, priv_size)
    assert jnp.allclose(pred, ref, atol=5e-2, rtol=5e-2), "mismatch vs reference"
    assert next_hidden.shape == hidden.shape
    assert bool(jnp.all(next_hidden == hidden))

    print("KERNEL_OK")
</pallas_src>

<mosaic_0001>
module attributes {stable_mosaic.version = 11 : i64} {
  func.func @mlp_kernel(%arg0: i32, %arg1: memref<16x32xbf16, #tpu.memory_space<vmem>>, %arg2: memref<32x64xbf16, #tpu.memory_space<vmem>>, %arg3: memref<1x64xf32, #tpu.memory_space<vmem>>, %arg4: memref<64x32xbf16, #tpu.memory_space<vmem>>, %arg5: memref<1x32xf32, #tpu.memory_space<vmem>>, %arg6: memref<32x16xbf16, #tpu.memory_space<vmem>>, %arg7: memref<1x16xf32, #tpu.memory_space<vmem>>, %arg8: memref<16x16xf32, #tpu.memory_space<vmem>>) attributes {dimension_semantics = [#tpu.dimension_semantics<parallel>], iteration_bounds = array<i64: 1>, scalar_prefetch = 0 : i64, scratch_operands = 0 : i64, tpu.core_type = #tpu.core_type<tc>, window_params = [{transform_indices = @transform_0, window_bounds = array<i64: 16, 32>}, {pipeline_mode = #tpu.pipeline_mode<synchronous>, transform_indices = @transform_1, window_bounds = array<i64: 32, 64>}, {pipeline_mode = #tpu.pipeline_mode<synchronous>, transform_indices = @transform_2, window_bounds = array<i64: 1, 64>}, {pipeline_mode = #tpu.pipeline_mode<synchronous>, transform_indices = @transform_3, window_bounds = array<i64: 64, 32>}, {pipeline_mode = #tpu.pipeline_mode<synchronous>, transform_indices = @transform_4, window_bounds = array<i64: 1, 32>}, {pipeline_mode = #tpu.pipeline_mode<synchronous>, transform_indices = @transform_5, window_bounds = array<i64: 32, 16>}, {pipeline_mode = #tpu.pipeline_mode<synchronous>, transform_indices = @transform_6, window_bounds = array<i64: 1, 16>}, {transform_indices = @transform_7, window_bounds = array<i64: 16, 16>}]} {
    %c0 = arith.constant 0 : index
    %c0_0 = arith.constant 0 : index
    %0 = vector.load %arg1[%c0, %c0_0] : memref<16x32xbf16, #tpu.memory_space<vmem>>, vector<16x32xbf16>
    %c0_1 = arith.constant 0 : index
    %c0_2 = arith.constant 0 : index
    %1 = vector.load %arg2[%c0_1, %c0_2] : memref<32x64xbf16, #tpu.memory_space<vmem>>, vector<32x64xbf16>
    %cst = arith.constant dense<0.000000e+00> : vector<16x64xf32>
    %2 = tpu.matmul %0, %1, %cst {dimension_numbers = #tpu.dot_dimension_numbers<[1], [0], [0], [1], [0, 0, 1, 1], [], []>} : vector<16x32xbf16>, vector<32x64xbf16>, vector<16x64xf32> -> vector<16x64xf32>
    %c0_3 = arith.constant 0 : index
    %c0_4 = arith.constant 0 : index
    %3 = vector.load %arg3[%c0_3, %c0_4] : memref<1x64xf32, #tpu.memory_space<vmem>>, vector<1x64xf32>
    %4 = vector.broadcast %3 : vector<1x64xf32> to vector<16x64xf32>
    %5 = arith.addf %2, %4 : vector<16x64xf32>
    %cst_5 = arith.constant 0.000000e+00 : f32
    %6 = vector.broadcast %cst_5 : f32 to vector<16x64xf32>
    %7 = arith.cmpf ogt, %5, %6 : vector<16x64xf32>
    %cst_6 = arith.constant 0.00999999977 : f32
    %8 = vector.broadcast %cst_6 : f32 to vector<16x64xf32>
    %9 = arith.mulf %8, %5 : vector<16x64xf32>
    %10 = arith.select %7, %5, %9 : vector<16x64xi1>, vector<16x64xf32>
    %11 = arith.truncf %10 : vector<16x64xf32> to vector<16x64xbf16>
    %c0_7 = arith.constant 0 : index
    %c0_8 = arith.constant 0 : index
    %12 = vector.load %arg4[%c0_7, %c0_8] : memref<64x32xbf16, #tpu.memory_space<vmem>>, vector<64x32xbf16>
    %cst_9 = arith.constant dense<0.000000e+00> : vector<16x32xf32>
    %13 = tpu.matmul %11, %12, %cst_9 {dimension_numbers = #tpu.dot_dimension_numbers<[1], [0], [0], [1], [0, 0, 1, 1], [], []>} : vector<16x64xbf16>, vector<64x32xbf16>, vector<16x32xf32> -> vector<16x32xf32>
    %c0_10 = arith.constant 0 : index
    %c0_11 = arith.constant 0 : index
    %14 = vector.load %arg5[%c0_10, %c0_11] : memref<1x32xf32, #tpu.memory_space<vmem>>, vector<1x32xf32>
    %15 = vector.broadcast %14 : vector<1x32xf32> to vector<16x32xf32>
    %16 = arith.addf %13, %15 : vector<16x32xf32>
    %cst_12 = arith.constant 0.000000e+00 : f32
    %17 = vector.broadcast %cst_12 : f32 to vector<16x32xf32>
    %18 = arith.cmpf ogt, %16, %17 : vector<16x32xf32>
    %cst_13 = arith.constant 0.00999999977 : f32
    %19 = vector.broadcast %cst_13 : f32 to vector<16x32xf32>
    %20 = arith.mulf %19, %16 : vector<16x32xf32>
    %21 = arith.select %18, %16, %20 : vector<16x32xi1>, vector<16x32xf32>
    %22 = arith.truncf %21 : vector<16x32xf32> to vector<16x32xbf16>
    %c0_14 = arith.constant 0 : index
    %c0_15 = arith.constant 0 : index
    %23 = vector.load %arg6[%c0_14, %c0_15] : memref<32x16xbf16, #tpu.memory_space<vmem>>, vector<32x16xbf16>
    %cst_16 = arith.constant dense<0.000000e+00> : vector<16x16xf32>
    %24 = tpu.matmul %22, %23, %cst_16 {dimension_numbers = #tpu.dot_dimension_numbers<[1], [0], [0], [1], [0, 0, 1, 1], [], []>} : vector<16x32xbf16>, vector<32x16xbf16>, vector<16x16xf32> -> vector<16x16xf32>
    %c0_17 = arith.constant 0 : index
    %c0_18 = arith.constant 0 : index
    %25 = vector.load %arg7[%c0_17, %c0_18] : memref<1x16xf32, #tpu.memory_space<vmem>>, vector<1x16xf32>
    %26 = vector.broadcast %25 : vector<1x16xf32> to vector<16x16xf32>
    %27 = arith.addf %24, %26 : vector<16x16xf32>
    %c0_19 = arith.constant 0 : index
    %c0_20 = arith.constant 0 : index
    %28 = vector.load %arg8[%c0_19, %c0_20] : memref<16x16xf32, #tpu.memory_space<vmem>>, vector<16x16xf32>
    tpu.vector_store %arg8[%c0_19, %c0_20], %27 {strides = array<i32>} : memref<16x16xf32, #tpu.memory_space<vmem>>, vector<16x16xf32>,
    return
  }
  func.func @transform_0(%arg0: i32) -> (i32, i32) {
    %c0_i32 = arith.constant 0 : i32
    %c0_i32_0 = arith.constant 0 : i32
    return %arg0, %c0_i32 : i32, i32
  }
  func.func @transform_1(%arg0: i32) -> (i32, i32) {
    %c0_i32 = arith.constant 0 : i32
    %c0_i32_0 = arith.constant 0 : i32
    %c0_i32_1 = arith.constant 0 : i32
    return %c0_i32, %c0_i32_0 : i32, i32
  }
  func.func @transform_2(%arg0: i32) -> (i32, i32) {
    %c0_i32 = arith.constant 0 : i32
    %c0_i32_0 = arith.constant 0 : i32
    %c0_i32_1 = arith.constant 0 : i32
    return %c0_i32, %c0_i32_0 : i32, i32
  }
  func.func @transform_3(%arg0: i32) -> (i32, i32) {
    %c0_i32 = arith.constant 0 : i32
    %c0_i32_0 = arith.constant 0 : i32
    %c0_i32_1 = arith.constant 0 : i32
    return %c0_i32, %c0_i32_0 : i32, i32
  }
  func.func @transform_4(%arg0: i32) -> (i32, i32) {
    %c0_i32 = arith.constant 0 : i32
    %c0_i32_0 = arith.constant 0 : i32
    %c0_i32_1 = arith.constant 0 : i32
    return %c0_i32, %c0_i32_0 : i32, i32
  }
  func.func @transform_5(%arg0: i32) -> (i32, i32) {
    %c0_i32 = arith.constant 0 : i32
    %c0_i32_0 = arith.constant 0 : i32
    %c0_i32_1 = arith.constant 0 : i32
    return %c0_i32, %c0_i32_0 : i32, i32
  }
  func.func @transform_6(%arg0: i32) -> (i32, i32) {
    %c0_i32 = arith.constant 0 : i32
    %c0_i32_0 = arith.constant 0 : i32
    %c0_i32_1 = arith.constant 0 : i32
    return %c0_i32, %c0_i32_0 : i32, i32
  }
  func.func @transform_7(%arg0: i32) -> (i32, i32) {
    %c0_i32 = arith.constant 0 : i32
    %c0_i32_0 = arith.constant 0 : i32
    return %arg0, %c0_i32 : i32, i32
  }
}

</mosaic_0001>

<llo_original>
// kernel: mlp_mode_forward.1
$region0: #{mlp_mode_forward.1}
  #allocation0 [shape = 'u32[]', space=smem, size = 0x4, offset = 0x4, fixed_abs, tag = 'smem constant byte address 0x4 - core index']
  #allocation1 [shape = 'u32[144,128]{1,0:T(1,128)}', space=vmem, size = 0x12000, scoped, tag = 'internal scratch']
  %s0 = inlined_call_operand.vmem [shape: bf16[16,32], index: 0, kind: input, shape index: {}]
  %s1 = inlined_call_operand.vmem [shape: bf16[32,64], index: 1, kind: input, shape index: {}]
  %s2 = inlined_call_operand.vmem [shape: f32[1,64], index: 2, kind: input, shape index: {}]
  %s3 = inlined_call_operand.vmem [shape: bf16[64,32], index: 3, kind: input, shape index: {}]
  %s4 = inlined_call_operand.vmem [shape: f32[1,32], index: 4, kind: input, shape index: {}]
  %s5 = inlined_call_operand.vmem [shape: bf16[32,16], index: 5, kind: input, shape index: {}]
  %s6 = inlined_call_operand.vmem [shape: f32[1,16], index: 6, kind: input, shape index: {}]
  %s7 = inlined_call_operand.hbm [shape: f32[16,16], index: 7, kind: output, shape index: {}]
  %s8 = sld [smem:[#allocation0]]
  $region38: #{mlp_mode_forward.1} parent=0
    _
  %s10 = ssub.s32 1, %s8
  %s11 = scalar_select 0, %s10, %s8
  $region1: #{mlp_mode_forward.1} parent=0
    #allocation2 [shape = 'u8[8192]{0}', space=vmem, size = 0x2000, scoped, tag = 'output window, operand 0, single buffered']
    #allocation3 [shape = 's32[1]{0}', space=sflag, size = 0x4, scoped, tag = 'scoped memory for mlp_mode_forward.1']
    %12 = vsyncpa [#allocation3], 0
    // Predicated region
    $region2: #{mlp_mode_forward.1} parent=1 // pred_check
      _
    $region3: #{mlp_mode_forward.1} parent=1 // pred_check_branch
      %14 = sbr.rel (0) target = $region5
    $region4: #{mlp_mode_forward.1} parent=1 // pred_region
      _
    $region5: #{mlp_mode_forward.1} parent=1 // pred_fallthru
      _
    // Predicated region
    $region6: #{mlp_mode_forward.1} parent=1 // pred_check
      _
    $region7: #{mlp_mode_forward.1} parent=1 // pred_check_branch
      %16 = sbr.rel (0) target = $region9
    $region8: #{mlp_mode_forward.1} parent=1 // pred_region
      _
    $region9: #{mlp_mode_forward.1} parent=1 // pred_fallthru
      _
    // Predicated region
    $region10: #{mlp_mode_forward.1} parent=1 // pred_check
      _
    $region11: #{mlp_mode_forward.1} parent=1 // pred_check_branch
      %18 = sbr.rel (0) target = $region13
    $region12: #{mlp_mode_forward.1} parent=1 // pred_region
      _
    $region13: #{mlp_mode_forward.1} parent=1 // pred_fallthru
      _
    // Predicated region
    $region14: #{mlp_mode_forward.1} parent=1 // pred_check
      _
    $region15: #{mlp_mode_forward.1} parent=1 // pred_check_branch
      %20 = sbr.rel (0) target = $region17
    $region16: #{mlp_mode_forward.1} parent=1 // pred_region
      _
    $region17: #{mlp_mode_forward.1} parent=1 // pred_fallthru
      _
    // Predicated region
    $region18: #{mlp_mode_forward.1} parent=1 // pred_check
      _
    $region19: #{mlp_mode_forward.1} parent=1 // pred_check_branch
      %22 = sbr.rel (0) target = $region21
    $region20: #{mlp_mode_forward.1} parent=1 // pred_region
      _
    $region21: #{mlp_mode_forward.1} parent=1 // pred_fallthru
      _
    // Predicated region
    $region22: #{mlp_mode_forward.1} parent=1 // pred_check
      _
    $region23: #{mlp_mode_forward.1} parent=1 // pred_check_branch
      %24 = sbr.rel (0) target = $region25
    $region24: #{mlp_mode_forward.1} parent=1 // pred_region
      _
    $region25: #{mlp_mode_forward.1} parent=1 // pred_fallthru
      _
    // Predicated region
    $region26: #{mlp_mode_forward.1} parent=1 // pred_check
      _
    $region27: #{mlp_mode_forward.1} parent=1 // pred_check_branch
      %26 = sbr.rel (0) target = $region29
    $region28: #{mlp_mode_forward.1} parent=1 // pred_region
      _
    $region29: #{mlp_mode_forward.1} parent=1 // pred_fallthru
      _
    %v28 = vld [vmem:[%s0] sm:$0xf]
    %v29 = vld [vmem:[%s0 + $0x4] sm:$0xf]
    %v30 = vld [vmem:[%s1] sm:$0xf]
    %v31 = vld [vmem:[%s1 + $0x4] sm:$0xf]
    %v32 = vld [vmem:[%s1 + $0x8] sm:$0xf]
    %v33 = vld [vmem:[%s1 + $0xc] sm:$0xf]
    %v34 = vld [vmem:[%s2] sm:$0x1]
    %v36 = vlaneseq
    %v37 = vshrl.u32 %v36, 7
    %v38 = vsub.s32 0, %v37
    %v39 = vrot.slane %v34, %v38
    %v43 = vunpack.c.l.b16 %v28
    %v44 = vunpack.c.l.b16 %v29
    %v45 = vpack.c.b16 %v44, %v43
    %v50 = vunpack.c.l.b16 %v30
    %v51 = vunpack.c.l.b16 %v31
    %v52 = vunpack.c.l.b16 %v32
    %v53 = vunpack.c.l.b16 %v33
    %v54 = vpack.c.b16 %v51, %v50
    %v55 = vpack.c.b16 %v53, %v52
    %vm58 = vcmask 261120
    %v60 = vsel %vm58, %v45, 0
    %62 = vmatprep.subr.bf16.mxu0 0
    %63 = vmatpush1.bf16.msra.mxu0 %v54
    %64 = vmatprep.subr.bf16.mxu0 0
    %65 = vmatpush1.bf16.msra.mxu0 %v55
    %66 = vmatprep.subr.bf16.mxu0 0
    %67 = vmatpush1.bf16.msra.mxu0 0
    %68 = vmatprep.subr.bf16.mxu0 0
    %69 = vmatpush1.bf16.msra.mxu0 0
    %70 = vmatprep.subr.bf16.mxu0 0
    %71 = vmatpush1.bf16.msra.mxu0 0
    %72 = vmatprep.subr.bf16.mxu0 0
    %73 = vmatpush1.bf16.msra.mxu0 0
    %74 = vmatprep.subr.bf16.mxu0 0
    %75 = vmatpush1.bf16.msra.mxu0 0
    %76 = vmatprep.subr.bf16.mxu0 0
    %77 = vmatpush1.bf16.msra.mxu0 0
    %78 = vmatprep.subr.bf16.mxu0 0
    %79 = vmatpush1.bf16.msra.mxu0 0
    %80 = vmatprep.subr.bf16.mxu0 0
    %81 = vmatpush1.bf16.msra.mxu0 0
    %82 = vmatprep.subr.bf16.mxu0 0
    %83 = vmatpush1.bf16.msra.mxu0 0
    %84 = vmatprep.subr.bf16.mxu0 0
    %85 = vmatpush1.bf16.msra.mxu0 0
    %86 = vmatprep.subr.bf16.mxu0 0
    %87 = vmatpush1.bf16.msra.mxu0 0
    %88 = vmatprep.subr.bf16.mxu0 0
    %89 = vmatpush1.bf16.msra.mxu0 0
    %90 = vmatprep.subr.bf16.mxu0 0
    %91 = vmatpush1.bf16.msra.mxu0 0
    %92 = vmatprep.subr.bf16.mxu0 0
    %93 = vmatpush1.bf16.msra.mxu0 0
    %94 = vmatprep.mubr.bf16.mxu0 0
    %95 = vmatmul.mubr.bf16.gmra.mrb[0].mxu0 %v60
    %v96 = vpop.f32.mrb[0].mxu0
    %v97 = vadd.f32 %v39, %v96
    %v98 = vpop.f32.mrb[0].mxu0
    %v99 = vpop.f32.mrb[0].mxu0
    %v100 = vadd.f32 %v39, %v99
    %v101 = vpop.f32.mrb[0].mxu0
    %102 = vdwg.mxu0
    %vm103 = vcmp.gt.f32.partialorder %v97, 0.0
    %vm104 = vcmp.gt.f32.partialorder %v100, 0.0
    %v105 = vmul.f32 %v97, 0.01
    %v106 = vmul.f32 %v100, 0.01
    %v107 = vsel %vm103, %v97, %v105
    %v108 = vsel %vm104, %v100, %v106
    %v109 = vpack.c.bf16 %v108, %v107
    %v110 = vld [vmem:[%s3] sm:$0xf]
    %v111 = vld [vmem:[%s3 + $0x4] sm:$0xf]
    %v112 = vld [vmem:[%s3 + $0x8] sm:$0xf]
    %v113 = vld [vmem:[%s3 + $0xc] sm:$0xf]
    %v114 = vld [vmem:[%s3 + $0x10] sm:$0xf]
    %v115 = vld [vmem:[%s3 + $0x14] sm:$0xf]
    %v116 = vld [vmem:[%s3 + $0x18] sm:$0xf]
    %v117 = vld [vmem:[%s3 + $0x1c] sm:$0xf]
    %v118 = vld [vmem:[%s4] sm:$0x1]
    %v120 = vlaneseq
    %v121 = vshrl.u32 %v120, 7
    %v122 = vsub.s32 0, %v121
    %v123 = vrot.slane %v118, %v122
    %v133 = vunpack.c.l.b16 %v110
    %v134 = vunpack.c.l.b16 %v111
    %v135 = vunpack.c.l.b16 %v112
    %v136 = vunpack.c.l.b16 %v113
    %v137 = vunpack.c.l.b16 %v114
    %v138 = vunpack.c.l.b16 %v115
    %v139 = vunpack.c.l.b16 %v116
    %v140 = vunpack.c.l.b16 %v117
    %v141 = vpack.c.b16 %v134, %v133
    %v142 = vpack.c.b16 %v136, %v135
    %v143 = vpack.c.b16 %v138, %v137
    %v144 = vpack.c.b16 %v140, %v139
    %vm149 = vcmask 523264
    %v151 = vsel %vm149, %v109, 0
    %153 = vmatprep.subr.bf16.mxu0 0
    %154 = vmatpush1.bf16.msra.mxu0 %v141
    %155 = vmatprep.subr.bf16.mxu0 0
    %156 = vmatpush1.bf16.msra.mxu0 %v142
    %157 = vmatprep.subr.bf16.mxu0 0
    %158 = vmatpush1.bf16.msra.mxu0 %v143
    %159 = vmatprep.subr.bf16.mxu0 0
    %160 = vmatpush1.bf16.msra.mxu0 %v144
    %161 = vmatprep.subr.bf16.mxu0 0
    %162 = vmatpush1.bf16.msra.mxu0 0
    %163 = vmatprep.subr.bf16.mxu0 0
    %164 = vmatpush1.bf16.msra.mxu0 0
    %165 = vmatprep.subr.bf16.mxu0 0
    %166 = vmatpush1.bf16.msra.mxu0 0
    %167 = vmatprep.subr.bf16.mxu0 0
    %168 = vmatpush1.bf16.msra.mxu0 0
    %169 = vmatprep.subr.bf16.mxu0 0
    %170 = vmatpush1.bf16.msra.mxu0 0
    %171 = vmatprep.subr.bf16.mxu0 0
    %172 = vmatpush1.bf16.msra.mxu0 0
    %173 = vmatprep.subr.bf16.mxu0 0
    %174 = vmatpush1.bf16.msra.mxu0 0
    %175 = vmatprep.subr.bf16.mxu0 0
    %176 = vmatpush1.bf16.msra.mxu0 0
    %177 = vmatprep.subr.bf16.mxu0 0
    %178 = vmatpush1.bf16.msra.mxu0 0
    %179 = vmatprep.subr.bf16.mxu0 0
    %180 = vmatpush1.bf16.msra.mxu0 0
    %181 = vmatprep.subr.bf16.mxu0 0
    %182 = vmatpush1.bf16.msra.mxu0 0
    %183 = vmatprep.subr.bf16.mxu0 0
    %184 = vmatpush1.bf16.msra.mxu0 0
    %185 = vmatprep.mubr.bf16.mxu0 0
    %186 = vmatmul.mubr.bf16.gmra.mrb[0].mxu0 %v151
    %v187 = vpop.f32.mrb[0].mxu0
    %v188 = vadd.f32 %v123, %v187
    %v189 = vpop.f32.mrb[0].mxu0
    %v190 = vpop.f32.mrb[0].mxu0
    %v191 = vadd.f32 %v123, %v190
    %v192 = vpop.f32.mrb[0].mxu0
    %193 = vdwg.mxu0
    %vm194 = vcmp.gt.f32.partialorder %v188, 0.0
    %vm195 = vcmp.gt.f32.partialorder %v191, 0.0
    %v196 = vmul.f32 %v188, 0.01
    %v197 = vmul.f32 %v191, 0.01
    %v198 = vsel %vm194, %v188, %v196
    %v199 = vsel %vm195, %v191, %v197
    %v200 = vpack.c.bf16 %v199, %v198
    %v201 = vld [vmem:[%s5] sm:$0xf]
    %v202 = vld [vmem:[%s5 + $0x4] sm:$0xf]
    %v203 = vld [vmem:[%s5 + $0x8] sm:$0xf]
    %v204 = vld [vmem:[%s5 + $0xc] sm:$0xf]
    %v205 = vld [vmem:[%s6] sm:$0x1]
    %v207 = vlaneseq
    %v208 = vshrl.u32 %v207, 7
    %v209 = vsub.s32 0, %v208
    %v210 = vrot.slane %v205, %v209
    %v216 = vunpack.c.l.b16 %v201
    %v217 = vunpack.c.l.b16 %v202
    %v218 = vunpack.c.l.b16 %v203
    %v219 = vunpack.c.l.b16 %v204
    %v220 = vpack.c.b16 %v217, %v216
    %v221 = vpack.c.b16 %v219, %v218
    %v225 = vsel %vm58, %v200, 0
    %227 = vmatprep.subr.bf16.mxu0 0
    %228 = vmatpush1.bf16.msra.mxu0 %v220
    %229 = vmatprep.subr.bf16.mxu0 0
    %230 = vmatpush1.bf16.msra.mxu0 %v221
    %231 = vmatprep.subr.bf16.mxu0 0
    %232 = vmatpush1.bf16.msra.mxu0 0
    %233 = vmatprep.subr.bf16.mxu0 0
    %234 = vmatpush1.bf16.msra.mxu0 0
    %235 = vmatprep.subr.bf16.mxu0 0
    %236 = vmatpush1.bf16.msra.mxu0 0
    %237 = vmatprep.subr.bf16.mxu0 0
    %238 = vmatpush1.bf16.msra.mxu0 0
    %239 = vmatprep.subr.bf16.mxu0 0
    %240 = vmatpush1.bf16.msra.mxu0 0
    %241 = vmatprep.subr.bf16.mxu0 0
    %242 = vmatpush1.bf16.msra.mxu0 0
    %243 = vmatprep.subr.bf16.mxu0 0
    %244 = vmatpush1.bf16.msra.mxu0 0
    %245 = vmatprep.subr.bf16.mxu0 0
    %246 = vmatpush1.bf16.msra.mxu0 0
    %247 = vmatprep.subr.bf16.mxu0 0
    %248 = vmatpush1.bf16.msra.mxu0 0
    %249 = vmatprep.subr.bf16.mxu0 0
    %250 = vmatpush1.bf16.msra.mxu0 0
    %251 = vmatprep.subr.bf16.mxu0 0
    %252 = vmatpush1.bf16.msra.mxu0 0
    %253 = vmatprep.subr.bf16.mxu0 0
    %254 = vmatpush1.bf16.msra.mxu0 0
    %255 = vmatprep.subr.bf16.mxu0 0
    %256 = vmatpush1.bf16.msra.mxu0 0
    %257 = vmatprep.subr.bf16.mxu0 0
    %258 = vmatpush1.bf16.msra.mxu0 0
    %259 = vmatprep.mubr.bf16.mxu0 0
    %260 = vmatmul.mubr.bf16.gmra.mrb[0].mxu0 %v225
    %v261 = vpop.f32.mrb[0].mxu0
    %v262 = vadd.f32 %v210, %v261
    %v263 = vpop.f32.mrb[0].mxu0
    %v264 = vpop.f32.mrb[0].mxu0
    %v265 = vadd.f32 %v210, %v264
    %v266 = vpop.f32.mrb[0].mxu0
    %267 = vdwg.mxu0
    %vm268 = vcmask 130048
    %269 = vst.msk [vmem:[#allocation2] sm:$0xff] %vm268, %v262
    %270 = vst.msk [vmem:[#allocation2 + $0x8] sm:$0xff] %vm268, %v265
    // Predicated region
    $region30: #{mlp_mode_forward.1} parent=1 // pred_check
      _
    $region31: #{mlp_mode_forward.1} parent=1 // pred_check_branch
      %272 = sbr.rel (0) target = $region33
    $region32: #{mlp_mode_forward.1} parent=1 // pred_region
      %s274 = ssub.s32 256, 256
      %275 = vsyncadd [#allocation3], %s274
      %s276 = sshll.u32 [#allocation2], 4
      %s277 = int_to_ptr.vmem [resolvable:$true] %s276
      %282 = dma.vmem_to_hbm [thread:$0]  %s277, 256, %s7, [#allocation3], 128, 128, 8
    $region33: #{mlp_mode_forward.1} parent=1 // pred_fallthru
      _
    // Predicated region
    $region34: #{mlp_mode_forward.1} parent=1 // pred_check
      _
    $region35: #{mlp_mode_forward.1} parent=1 // pred_check_branch
      %284 = sbr.rel (0) target = $region37
    $region36: #{mlp_mode_forward.1} parent=1 // pred_region
      %285 = dma.done [#allocation3], 256
    $region37: #{mlp_mode_forward.1} parent=1 // pred_fallthru
      _
    %286 = vsyncpa [#allocation3], 1

</llo_original>
